<compile_context>
chip_gen: v7x
topology: tpu7x:2x2x1
jax: 0.10.0
libtpu: 0.0.40
codegen_flags: <defaults>
</compile_context>

<pallas_src>
import functools
import math

import jax
import jax.numpy as jnp
from jax.experimental import pallas as pl
from jax.experimental.pallas import tpu as pltpu


def _round_up(x, m):
    return (x + m - 1) // m * m


def _bits_to_unit(bits_i32):
    """int32 random bits -> f32 uniform in [0, 1) using the 24 low bits."""
    m = jnp.bitwise_and(bits_i32, jnp.int32(0x00FFFFFF))
    return m.astype(jnp.float32) * jnp.float32(1.0 / (1 << 24))


def _box_muller(b1, b2):
    """Two int32 bit blocks -> two independent standard-normal blocks."""
    u1 = 1.0 - _bits_to_unit(b1)                 # (0, 1], safe for log
    u2 = _bits_to_unit(b2)                       # [0, 1)
    r = jnp.sqrt(-2.0 * jnp.log(u1))
    theta = jnp.float32(2.0 * math.pi) * u2
    return r * jnp.cos(theta), r * jnp.sin(theta)


def _std_normal_kernel(b1_ref, b2_ref, o_ref):
    half = b1_ref.shape[0]
    z_lo, z_hi = _box_muller(b1_ref[...], b2_ref[...])
    o_ref[0:half, :] = z_lo.astype(o_ref.dtype)
    o_ref[half:, :] = z_hi.astype(o_ref.dtype)


def _prior_kernel(loc_ref, logscale_ref, b1_ref, b2_ref, o_ref, *, dist_type):
    half = b1_ref.shape[0]
    loc = loc_ref[...]
    scale = jnp.exp(logscale_ref[...])           # param_b.exp()

    if dist_type in ("normal", "lognormal"):
        z_lo, z_hi = _box_muller(b1_ref[...], b2_ref[...])
        x_lo = loc[0:half] + scale[0:half] * z_lo
        x_hi = loc[half:] + scale[half:] * z_hi
        if dist_type == "lognormal":
            x_lo = jnp.exp(x_lo)
            x_hi = jnp.exp(x_hi)
    elif dist_type == "laplace":
        # torch.distributions.Laplace.rsample:
        #   u ~ Uniform(-1, 1);  x = loc - scale * sign(u) * log1p(-|u|)
        def _laplace(bits, lo, sc):
            u = 2.0 * _bits_to_unit(bits) - 1.0
            au = jnp.minimum(jnp.abs(u), 1.0 - 1e-7)
            sgn = jnp.where(u >= 0.0, 1.0, -1.0)     # copysign-style (no sign(0)=0)
            return lo - sc * sgn * jnp.log(1.0 - au)
        x_lo = _laplace(b1_ref[...], loc[0:half], scale[0:half])
        x_hi = _laplace(b2_ref[...], loc[half:], scale[half:])
    else:
        raise NotImplementedError(f"dist_type={dist_type!r}")

    o_ref[0:half, :] = x_lo.astype(o_ref.dtype)
    o_ref[half:, :] = x_hi.astype(o_ref.dtype)


def prior_dist_sample(param_a, param_b, *, nbatch=1, key=None,
                      dist_type="normal", max_rows_per_step=2048):
    """JAX/Pallas equivalent of prior_dist(dist_type, dim_tensor)(nbatch)."""
    if dist_type == "gamma":
        # TODO(synk): Gamma.rsample uses rejection sampling (Marsaglia-Tsang);
        # there is no clean data-independent Pallas equivalent.
        raise NotImplementedError("gamma prior is not implemented in Pallas")

    if key is None:
        key = jax.random.PRNGKey(0)

    param_a = jnp.asarray(param_a, jnp.float32)
    param_b = jnp.asarray(param_b, jnp.float32)
    b0, d = param_a.shape
    n = b0 * nbatch

    # ---- tiling: lane-dense blocks, many rows per grid step ----------------
    d_pad = _round_up(d, 128)
    tm = min(_round_up(n, 16), _round_up(max_rows_per_step, 16))
    # Keep the per-step working set comfortably inside the default scoped VMEM
    # on v5e / v6e / v7x (output block <= ~1 MiB; double-buffered total ~8 MiB).
    while tm > 16 and tm * d_pad * 4 > (1 << 20):
        tm //= 2
    tm = max(16, _round_up(tm, 16))
    n_pad = _round_up(n, tm)
    grid = (n_pad // tm,)
    half = tm // 2

    # ---- random bits (generated via jax.random; transform stays in-kernel) --
    k1, k2 = jax.random.split(key)
    bshape = (n_pad // 2, d_pad)
    bits1 = jax.lax.bitcast_convert_type(
        jax.random.bits(k1, bshape, jnp.uint32), jnp.int32)
    bits2 = jax.lax.bitcast_convert_type(
        jax.random.bits(k2, bshape, jnp.uint32), jnp.int32)

    bits_spec = pl.BlockSpec((half, d_pad), lambda i: (i, 0))
    row_spec = pl.BlockSpec((tm, d_pad), lambda i: (i, 0))
    out_shape = jax.ShapeDtypeStruct((n_pad, d_pad), jnp.float32)
    cparams = pltpu.CompilerParams(dimension_semantics=("parallel",))

    if dist_type == "std":
        out = pl.pallas_call(
            _std_normal_kernel,
            out_shape=out_shape,
            grid=grid,
            in_specs=[bits_spec, bits_spec],
            out_specs=row_spec,
            compiler_params=cparams,
        )(bits1, bits2)
    else:
        # repeat_interleave(nbatch, dim=0) of the parameter rows, padded out to
        # the tile grid (padded rows / lanes are sliced away below).
        loc = jnp.repeat(param_a, nbatch, axis=0)
        log_scale = jnp.repeat(param_b, nbatch, axis=0)
        pad = ((0, n_pad - n), (0, d_pad - d))
        loc = jnp.pad(loc, pad)
        log_scale = jnp.pad(log_scale, pad)

        out = pl.pallas_call(
            functools.partial(_prior_kernel, dist_type=dist_type),
            out_shape=out_shape,
            grid=grid,
            in_specs=[row_spec, row_spec, bits_spec, bits_spec],
            out_specs=row_spec,
            compiler_params=cparams,
        )(loc, log_scale, bits1, bits2)

    return out[:n, :d]


if __name__ == "__main__":
    key = jax.random.PRNGKey(0)
    B0, D = 2, 40            # dim_tensor shape (2, 40)
    nbatch = 5

    ka, kb, ks = jax.random.split(key, 3)
    # The torch module initializes param_a / param_b as zeros_like(dim_tensor);
    # perturb them deterministically so loc / scale are non-trivial.
    param_a = 0.1 * jax.random.normal(ka, (B0, D), jnp.float32)
    param_b = 0.1 * jax.random.normal(kb, (B0, D), jnp.float32)

    results = {}
    for i, dist_type in enumerate(("normal", "lognormal", "laplace", "std")):
        x = prior_dist_sample(param_a, param_b, nbatch=nbatch,
                              key=jax.random.fold_in(ks, i),
                              dist_type=dist_type)
        jax.block_until_ready(x)
        assert x.shape == (B0 * nbatch, D), (dist_type, x.shape)
        assert x.dtype == jnp.float32
        assert bool(jnp.all(jnp.isfinite(x))), dist_type
        results[dist_type] = x

    # lognormal samples must be strictly positive
    assert bool(jnp.all(results["lognormal"] > 0.0))

    # repeat_interleave / loc handling check: with a tiny scale, Normal samples
    # collapse onto loc = repeat_interleave(param_a, nbatch, dim=0).
    x_loc = prior_dist_sample(param_a, jnp.full((B0, D), -20.0, jnp.float32),
                              nbatch=nbatch, key=ks, dist_type="normal")
    jax.block_until_ready(x_loc)
    ref_loc = jnp.repeat(param_a, nbatch, axis=0)
    assert bool(jnp.allclose(x_loc, ref_loc, atol=1e-5)), "loc mismatch"

    print("KERNEL_OK")
</pallas_src>

<mosaic_0001>
module attributes {stable_mosaic.version = 11 : i64} {
  func.func @_prior_kernel(%arg0: i32, %arg1: memref<16x128xf32, #tpu.memory_space<vmem>>, %arg2: memref<16x128xf32, #tpu.memory_space<vmem>>, %arg3: memref<8x128xi32, #tpu.memory_space<vmem>>, %arg4: memref<8x128xi32, #tpu.memory_space<vmem>>, %arg5: memref<16x128xf32, #tpu.memory_space<vmem>>) attributes {dimension_semantics = [#tpu.dimension_semantics<parallel>], iteration_bounds = array<i64: 1>, scalar_prefetch = 0 : i64, scratch_operands = 0 : i64, tpu.core_type = #tpu.core_type<tc>, window_params = [{transform_indices = @transform_0, window_bounds = array<i64: 16, 128>}, {transform_indices = @transform_1, window_bounds = array<i64: 16, 128>}, {transform_indices = @transform_2, window_bounds = array<i64: 8, 128>}, {transform_indices = @transform_3, window_bounds = array<i64: 8, 128>}, {transform_indices = @transform_4, window_bounds = array<i64: 16, 128>}]} {
    %c0 = arith.constant 0 : index
    %c0_0 = arith.constant 0 : index
    %0 = vector.load %arg1[%c0, %c0_0] : memref<16x128xf32, #tpu.memory_space<vmem>>, vector<16x128xf32>
    %c0_1 = arith.constant 0 : index
    %c0_2 = arith.constant 0 : index
    %1 = vector.load %arg2[%c0_1, %c0_2] : memref<16x128xf32, #tpu.memory_space<vmem>>, vector<16x128xf32>
    %2 = math.exp %1 : vector<16x128xf32>
    %c0_3 = arith.constant 0 : index
    %c0_4 = arith.constant 0 : index
    %3 = vector.load %arg3[%c0_3, %c0_4] : memref<8x128xi32, #tpu.memory_space<vmem>>, vector<8x128xi32>
    %c0_5 = arith.constant 0 : index
    %c0_6 = arith.constant 0 : index
    %4 = vector.load %arg4[%c0_5, %c0_6] : memref<8x128xi32, #tpu.memory_space<vmem>>, vector<8x128xi32>
    %c16777215_i32 = arith.constant 16777215 : i32
    %5 = vector.broadcast %c16777215_i32 : i32 to vector<8x128xi32>
    %6 = arith.andi %3, %5 : vector<8x128xi32>
    %7 = arith.sitofp %6 : vector<8x128xi32> to vector<8x128xf32>
    %cst = arith.constant 5.96046448E-8 : f32
    %8 = vector.broadcast %cst : f32 to vector<8x128xf32>
    %9 = arith.mulf %7, %8 : vector<8x128xf32>
    %cst_7 = arith.constant 1.000000e+00 : f32
    %10 = vector.broadcast %cst_7 : f32 to vector<8x128xf32>
    %11 = arith.subf %10, %9 : vector<8x128xf32>
    %c16777215_i32_8 = arith.constant 16777215 : i32
    %12 = vector.broadcast %c16777215_i32_8 : i32 to vector<8x128xi32>
    %13 = arith.andi %4, %12 : vector<8x128xi32>
    %14 = arith.sitofp %13 : vector<8x128xi32> to vector<8x128xf32>
    %cst_9 = arith.constant 5.96046448E-8 : f32
    %15 = vector.broadcast %cst_9 : f32 to vector<8x128xf32>
    %16 = arith.mulf %14, %15 : vector<8x128xf32>
    %17 = math.log %11 : vector<8x128xf32>
    %cst_10 = arith.constant -2.000000e+00 : f32
    %18 = vector.broadcast %cst_10 : f32 to vector<8x128xf32>
    %19 = arith.mulf %18, %17 : vector<8x128xf32>
    %20 = math.sqrt %19 : vector<8x128xf32>
    %cst_11 = arith.constant 6.28318548 : f32
    %21 = vector.broadcast %cst_11 : f32 to vector<8x128xf32>
    %22 = arith.mulf %21, %16 : vector<8x128xf32>
    %23 = math.cos %22 : vector<8x128xf32>
    %24 = arith.mulf %20, %23 : vector<8x128xf32>
    %25 = math.sin %22 : vector<8x128xf32>
    %26 = arith.mulf %20, %25 : vector<8x128xf32>
    %27 = vector.extract_strided_slice %0 {offsets = [0, 0], sizes = [8, 128], strides = [1, 1]} : vector<16x128xf32> to vector<8x128xf32>
    %28 = vector.extract_strided_slice %2 {offsets = [0, 0], sizes = [8, 128], strides = [1, 1]} : vector<16x128xf32> to vector<8x128xf32>
    %29 = arith.mulf %28, %24 : vector<8x128xf32>
    %30 = arith.addf %27, %29 : vector<8x128xf32>
    %31 = vector.extract_strided_slice %0 {offsets = [8, 0], sizes = [8, 128], strides = [1, 1]} : vector<16x128xf32> to vector<8x128xf32>
    %32 = vector.extract_strided_slice %2 {offsets = [8, 0], sizes = [8, 128], strides = [1, 1]} : vector<16x128xf32> to vector<8x128xf32>
    %33 = arith.mulf %32, %26 : vector<8x128xf32>
    %34 = arith.addf %31, %33 : vector<8x128xf32>
    %c0_12 = arith.constant 0 : index
    %c0_13 = arith.constant 0 : index
    %35 = vector.load %arg5[%c0_12, %c0_13] : memref<16x128xf32, #tpu.memory_space<vmem>>, vector<8x128xf32>
    tpu.vector_store %arg5[%c0_12, %c0_13], %30 {strides = array<i32>} : memref<16x128xf32, #tpu.memory_space<vmem>>, vector<8x128xf32>,
    %c8 = arith.constant 8 : index
    %c0_14 = arith.constant 0 : index
    %36 = vector.load %arg5[%c8, %c0_14] : memref<16x128xf32, #tpu.memory_space<vmem>>, vector<8x128xf32>
    tpu.vector_store %arg5[%c8, %c0_14], %34 {strides = array<i32>} : memref<16x128xf32, #tpu.memory_space<vmem>>, vector<8x128xf32>,
    return
  }
  func.func @transform_0(%arg0: i32) -> (i32, i32) {
    %c0_i32 = arith.constant 0 : i32
    %c0_i32_0 = arith.constant 0 : i32
    return %arg0, %c0_i32 : i32, i32
  }
  func.func @transform_1(%arg0: i32) -> (i32, i32) {
    %c0_i32 = arith.constant 0 : i32
    %c0_i32_0 = arith.constant 0 : i32
    return %arg0, %c0_i32 : i32, i32
  }
  func.func @transform_2(%arg0: i32) -> (i32, i32) {
    %c0_i32 = arith.constant 0 : i32
    %c0_i32_0 = arith.constant 0 : i32
    return %arg0, %c0_i32 : i32, i32
  }
  func.func @transform_3(%arg0: i32) -> (i32, i32) {
    %c0_i32 = arith.constant 0 : i32
    %c0_i32_0 = arith.constant 0 : i32
    return %arg0, %c0_i32 : i32, i32
  }
  func.func @transform_4(%arg0: i32) -> (i32, i32) {
    %c0_i32 = arith.constant 0 : i32
    %c0_i32_0 = arith.constant 0 : i32
    return %arg0, %c0_i32 : i32, i32
  }
}

</mosaic_0001>

<llo_original>
// kernel: tpu_custom_call.1
$region0: #{tpu_custom_call.1}
  #allocation0 [shape = 'u32[]', space=smem, size = 0x4, offset = 0x4, fixed_abs, tag = 'smem constant byte address 0x4 - core index']
  #allocation1 [shape = 'u32[144,128]{1,0:T(1,128)}', space=vmem, size = 0x12000, scoped, tag = 'internal scratch']
  %s0 = inlined_call_operand.hbm [shape: f32[16,128], index: 0, kind: input, shape index: {}]
  %s1 = inlined_call_operand.hbm [shape: f32[16,128], index: 1, kind: input, shape index: {}]
  %s2 = inlined_call_operand.hbm [shape: s32[8,128], index: 2, kind: input, shape index: {}]
  %s3 = inlined_call_operand.vmem [shape: s32[8,128], index: 3, kind: input, shape index: {}]
  %s4 = inlined_call_operand.hbm [shape: f32[16,128], index: 4, kind: output, shape index: {}]
  %s5 = sld [smem:[#allocation0]]
  $region38: #{tpu_custom_call.1} parent=0
    _
  %s7 = ssub.s32 1, %s5
  %s8 = scalar_select 0, %s7, %s5
  $region1: #{tpu_custom_call.1} parent=0
    #allocation2 [shape = 'u8[8192]{0}', space=vmem, size = 0x2000, scoped, tag = 'input window, operand 0, single buffered']
    #allocation3 [shape = 's32[1]{0}', space=sflag, size = 0x4, scoped, tag = 'scoped memory for tpu_custom_call.1']
    #allocation4 [shape = 's32[1]{0}', space=sflag, size = 0x4, scoped, tag = 'scoped memory for tpu_custom_call.1']
    #allocation5 [shape = 'u8[8192]{0}', space=vmem, size = 0x2000, scoped, tag = 'input window, operand 1, single buffered']
    #allocation6 [shape = 's32[1]{0}', space=sflag, size = 0x4, scoped, tag = 'scoped memory for tpu_custom_call.1']
    #allocation7 [shape = 'u8[4096]{0}', space=vmem, size = 0x1000, scoped, tag = 'input window, operand 2, single buffered']
    #allocation8 [shape = 'u8[8192]{0}', space=vmem, size = 0x2000, scoped, tag = 'output window, operand 0, single buffered']
    %9 = vsyncpa [#allocation3], 0
    %10 = vsyncpa [#allocation6], 0
    %11 = vsyncpa [#allocation4], 0
    // Predicated region
    $region2: #{tpu_custom_call.1} parent=1 // pred_check
      _
    $region3: #{tpu_custom_call.1} parent=1 // pred_check_branch
      %13 = sbr.rel (0) target = $region5
    $region4: #{tpu_custom_call.1} parent=1 // pred_region
      %s15 = ssub.s32 256, 256
      %16 = vsyncadd [#allocation3], %s15
      %s17 = sshll.u32 [#allocation2], 4
      %s18 = int_to_ptr.vmem [resolvable:$true] %s17
      %23 = dma.hbm_to_vmem [thread:$0]  %s0, 256, %s18, [#allocation3], 128, 128, 8
    $region5: #{tpu_custom_call.1} parent=1 // pred_fallthru
      _
    // Predicated region
    $region6: #{tpu_custom_call.1} parent=1 // pred_check
      _
    $region7: #{tpu_custom_call.1} parent=1 // pred_check_branch
      %25 = sbr.rel (0) target = $region9
    $region8: #{tpu_custom_call.1} parent=1 // pred_region
      %s27 = ssub.s32 256, 256
      %28 = vsyncadd [#allocation6], %s27
      %s29 = sshll.u32 [#allocation5], 4
      %s30 = int_to_ptr.vmem [resolvable:$true] %s29
      %35 = dma.hbm_to_vmem [thread:$0]  %s1, 256, %s30, [#allocation6], 128, 128, 8
    $region9: #{tpu_custom_call.1} parent=1 // pred_fallthru
      _
    // Predicated region
    $region10: #{tpu_custom_call.1} parent=1 // pred_check
      _
    $region11: #{tpu_custom_call.1} parent=1 // pred_check_branch
      %37 = sbr.rel (0) target = $region13
    $region12: #{tpu_custom_call.1} parent=1 // pred_region
      %s39 = ssub.s32 128, 128
      %40 = vsyncadd [#allocation6], %s39
      %s42 = sshll.u32 [#allocation7], 4
      %s43 = int_to_ptr.vmem [resolvable:$true] %s42
      %45 = dma.hbm_to_vmem [thread:$0]  %s2, 128, %s43, [#allocation6]
    $region13: #{tpu_custom_call.1} parent=1 // pred_fallthru
      _
    // Predicated region
    $region14: #{tpu_custom_call.1} parent=1 // pred_check
      _
    $region15: #{tpu_custom_call.1} parent=1 // pred_check_branch
      %47 = sbr.rel (0) target = $region17
    $region16: #{tpu_custom_call.1} parent=1 // pred_region
      _
    $region17: #{tpu_custom_call.1} parent=1 // pred_fallthru
      _
    // Predicated region
    $region18: #{tpu_custom_call.1} parent=1 // pred_check
      _
    $region19: #{tpu_custom_call.1} parent=1 // pred_check_branch
      %49 = sbr.rel (0) target = $region21
    $region20: #{tpu_custom_call.1} parent=1 // pred_region
      %50 = dma.done [#allocation3], 256
    $region21: #{tpu_custom_call.1} parent=1 // pred_fallthru
      _
    // Predicated region
    $region22: #{tpu_custom_call.1} parent=1 // pred_check
      _
    $region23: #{tpu_custom_call.1} parent=1 // pred_check_branch
      %52 = sbr.rel (0) target = $region25
    $region24: #{tpu_custom_call.1} parent=1 // pred_region
      %53 = dma.done [#allocation6], 256
    $region25: #{tpu_custom_call.1} parent=1 // pred_fallthru
      _
    // Predicated region
    $region26: #{tpu_custom_call.1} parent=1 // pred_check
      _
    $region27: #{tpu_custom_call.1} parent=1 // pred_check_branch
      %55 = sbr.rel (0) target = $region29
    $region28: #{tpu_custom_call.1} parent=1 // pred_region
      %56 = dma.done [#allocation6], 128
    $region29: #{tpu_custom_call.1} parent=1 // pred_fallthru
      _
    %v57 = vld [vmem:[#allocation2] sm:$0xff]
    %v58 = vld [vmem:[#allocation2 + $0x8] sm:$0xff]
    %v59 = vld [vmem:[#allocation5] sm:$0xff]
    %v60 = vld [vmem:[#allocation5 + $0x8] sm:$0xff]
    %v61 = vmul.f32 %v59, 1.442695
    %v62 = vpow.pop %v61
    %v63 = vmul.f32 %v60, 1.442695
    %v64 = vpow.pop %v63
    %v65 = vld [vmem:[#allocation7] sm:$0xff]
    %v66 = vld [vmem:[%s3] sm:$0xff]
    %v67 = vand.u32 %v65, 16777215
    %v68 = vcvt.s32.f32 %v67
    %v69 = vmul.f32 %v68, 5.9604645e-08
    %v70 = vsub.f32 1.0, %v69
    %v71 = vand.u32 %v66, 16777215
    %v72 = vcvt.s32.f32 %v71
    %v73 = vmul.f32 %v72, 5.9604645e-08
    %v74 = vlog2.pop %v70
    %v75 = vmul.f32 %v74, 0.6931472
    %v76 = vmul.f32 %v75, -2.0
    %v77 = vrsqrt.pop %v76
    %v78 = vmul.f32 %v76, %v77
    %vm79 = vcmp.eq.f32.partialorder %v76, inf
    %v80 = vsel %vm79, %v76, %v78
    %vm81 = vcmp.eq.f32.partialorder %v76, 0.0
    %v82 = vand.u32 %v76, 2147483648
    %v83 = vsel %vm81, %v82, %v80
    %v84 = vmul.f32 %v73, 6.2831855
    %v85 = vand.u32 2147483647, %v84
    %vm86 = vcmp.le.f32.partialorder %v85, 0.7853982
    %vm87 = vcmp.lt.s32.totalorder %v84, 0
    %v88 = vand.u32 %v84, 2139095040
    %v89 = vshrl.u32 %v88, 23
    %v90 = vsub.s32 %v89, 127
    %v91 = vand.u32 2147483647, %v84
    %v92 = vand.u32 %v91, 8388607
    %v93 = vor.u32 %v92, 8388608
    %v94 = vsub.s32 0, %v93
    %v95 = vadd.s32 %v90, 1
    %vm96 = vcmp.gt.s32.totalorder %v95, 0
    %v97 = vsel %vm96, %v95, 0
    %v98 = vshrl.u32 %v97, 5
    %v99 = vand.u32 %v97, 31
    %v100 = vsub.s32 32, %v99
    %v101 = vshrl.u32 683565275, %v100
    %v102 = vshll.u32 683565275, %v99
    %v103 = vshrl.u32 2475754826, %v100
    %v104 = vor.u32 %v102, %v103
    %v105 = vshll.u32 2475754826, %v99
    %v106 = vshrl.u32 2131351028, %v100
    %v107 = vor.u32 %v105, %v106
    %v108 = vshll.u32 2131351028, %v99
    %v109 = vshrl.u32 2102212464, %v100
    %v110 = vor.u32 %v108, %v109
    %v111 = vshll.u32 2102212464, %v99
    %v112 = vshrl.u32 920167782, %v100
    %v113 = vor.u32 %v111, %v112
    %v114 = vshll.u32 920167782, %v99
    %v115 = vshrl.u32 1326507024, %v100
    %v116 = vor.u32 %v114, %v115
    %vm117 = vcmp.lt.s32.totalorder %v98, 1
    %vm118 = vcmp.lt.s32.totalorder %v98, 2
    %vm119 = vcmp.lt.s32.totalorder %v98, 3
    %vm120 = vcmp.lt.s32.totalorder %v98, 4
    %v121 = vsel %vm117, %v101, %v104
    %v122 = vsel %vm120, %v110, 2102212464
    %v123 = vsel %vm119, %v107, %v122
    %v124 = vsel %vm118, %v121, %v123
    %v125 = vsel %vm117, %v104, %v107
    %v126 = vsel %vm120, %v113, 920167782
    %v127 = vsel %vm119, %v110, %v126
    %v128 = vsel %vm118, %v125, %v127
    %v129 = vsel %vm117, %v107, %v110
    %v130 = vsel %vm120, %v116, 1326507024
    %v131 = vsel %vm119, %v113, %v130
    %v132 = vsel %vm118, %v129, %v131
    %v133 = vshll.u32 %v93, 8
    %v134 = vmul.u32.u64.compose %v133, %v132
    %v135 = vextract.low.u32 %v134
    %v136 = vextract.high.u32 %v134
    %v137 = vmul.u32.u64.compose %v133, %v128
    %v138 = vextract.low.u32 %v137
    %v139 = vextract.high.u32 %v137
    %v140 = vmul.u32 %v133, %v124
    %v141 = vadd.s32 %v136, %v138
    %vm142 = vc.u32 %v136, %v138
    %v143 = vadd.s32 %v139, 1
    %v144 = vsel %vm142, %v143, %v139
    %v145 = vadd.s32 %v140, %v144
    %v146 = vadd.s32 %v145, 536870912
    %v147 = vshrl.u32 %v146, 30
    %v148 = vshll.u32 %v147, 30
    %v149 = vsub.s32 %v145, %v148
    %vm150 = vcmp.lt.s32.totalorder %v149, 0
    %v151 = vsub.s32 0, %v149
    %v152 = vsel %vm150, %v151, %v149
    %v153 = vclz %v152
    %v154 = vsub.s32 %v153, 2
    %vm155 = vcmp.gt.s32.totalorder 0, %v154
    %v156 = vsel %vm155, 0, %v154
    %v157 = vsub.s32 32, %v156
    %v158 = vshll.u32 %v149, %v156
    %v159 = vshrl.u32 %v141, %v157
    %v160 = vor.u32 %v158, %v159
    %v161 = vsub.s32 4294967266, %v156
    %v162 = vadd.s32 %v161, 127
    %v163 = vshll.u32 %v162, 23
    %v164 = vor.u32 4788187, %v163
    %v165 = vand.u32 2147483647, %v164
    %v167 = vcvt.s32.f32 %v160
    %v168 = vmul.f32 %v167, %v165
    %v169 = vxor.u32 %v168, 2147483648
    %v170 = vsel %vm87, %v169, %v168
    %v171 = vsub.s32 4, %v147
    %v172 = vsel %vm87, %v171, %v147
    %v173 = vsel %vm86, %v84, %v170
    %v174 = vsel %vm86, 0, %v172
    %v175 = vcosq.f32.pop %v173
    %v176 = vsinq.f32.pop %v173
    %vm177 = vweird.f32 %v84
    %v178 = vand.u32 %v174, 3
    %vm179 = vcmp.lt.s32.totalorder %v178, 2
    %vm180 = vcmp.eq.s32.totalorder %v178, 0
    %v181 = vxor.u32 %v176, 2147483648
    %v182 = vsel %vm180, %v175, %v181
    %vm183 = vcmp.eq.s32.totalorder %v178, 2
    %v184 = vxor.u32 %v175, 2147483648
    %v185 = vsel %vm183, %v184, %v176
    %v186 = vsel %vm179, %v182, %v185
    %v187 = vsel %vm177, nan, %v186
    %v188 = vmul.f32 %v83, %v187
    %v189 = vand.u32 2147483647, %v84
    %vm190 = vcmp.le.f32.partialorder %v189, 0.7853982
    %vm191 = vcmp.lt.s32.totalorder %v84, 0
    %v192 = vand.u32 %v84, 2139095040
    %v193 = vshrl.u32 %v192, 23
    %v194 = vsub.s32 %v193, 127
    %v195 = vand.u32 2147483647, %v84
    %v196 = vand.u32 %v195, 8388607
    %v197 = vor.u32 %v196, 8388608
    %v198 = vsub.s32 0, %v197
    %v199 = vadd.s32 %v194, 1
    %vm200 = vcmp.gt.s32.totalorder %v199, 0
    %v201 = vsel %vm200, %v199, 0
    %v202 = vshrl.u32 %v201, 5
    %v203 = vand.u32 %v201, 31
    %v204 = vsub.s32 32, %v203
    %v205 = vshrl.u32 683565275, %v204
    %v206 = vshll.u32 683565275, %v203
    %v207 = vshrl.u32 2475754826, %v204
    %v208 = vor.u32 %v206, %v207
    %v209 = vshll.u32 2475754826, %v203
    %v210 = vshrl.u32 2131351028, %v204
    %v211 = vor.u32 %v209, %v210
    %v212 = vshll.u32 2131351028, %v203
    %v213 = vshrl.u32 2102212464, %v204
    %v214 = vor.u32 %v212, %v213
    %v215 = vshll.u32 2102212464, %v203
    %v216 = vshrl.u32 920167782, %v204
    %v217 = vor.u32 %v215, %v216
    %v218 = vshll.u32 920167782, %v203
    %v219 = vshrl.u32 1326507024, %v204
    %v220 = vor.u32 %v218, %v219
    %vm221 = vcmp.lt.s32.totalorder %v202, 1
    %vm222 = vcmp.lt.s32.totalorder %v202, 2
    %vm223 = vcmp.lt.s32.totalorder %v202, 3
    %vm224 = vcmp.lt.s32.totalorder %v202, 4
    %v225 = vsel %vm221, %v205, %v208
    %v226 = vsel %vm224, %v214, 2102212464
    %v227 = vsel %vm223, %v211, %v226
    %v228 = vsel %vm222, %v225, %v227
    %v229 = vsel %vm221, %v208, %v211
    %v230 = vsel %vm224, %v217, 920167782
    %v231 = vsel %vm223, %v214, %v230
    %v232 = vsel %vm222, %v229, %v231
    %v233 = vsel %vm221, %v211, %v214
    %v234 = vsel %vm224, %v220, 1326507024
    %v235 = vsel %vm223, %v217, %v234
    %v236 = vsel %vm222, %v233, %v235
    %v237 = vshll.u32 %v197, 8
    %v238 = vmul.u32.u64.compose %v237, %v236
    %v239 = vextract.low.u32 %v238
    %v240 = vextract.high.u32 %v238
    %v241 = vmul.u32.u64.compose %v237, %v232
    %v242 = vextract.low.u32 %v241
    %v243 = vextract.high.u32 %v241
    %v244 = vmul.u32 %v237, %v228
    %v245 = vadd.s32 %v240, %v242
    %vm246 = vc.u32 %v240, %v242
    %v247 = vadd.s32 %v243, 1
    %v248 = vsel %vm246, %v247, %v243
    %v249 = vadd.s32 %v244, %v248
    %v250 = vadd.s32 %v249, 536870912
    %v251 = vshrl.u32 %v250, 30
    %v252 = vshll.u32 %v251, 30
    %v253 = vsub.s32 %v249, %v252
    %vm254 = vcmp.lt.s32.totalorder %v253, 0
    %v255 = vsub.s32 0, %v253
    %v256 = vsel %vm254, %v255, %v253
    %v257 = vclz %v256
    %v258 = vsub.s32 %v257, 2
    %vm259 = vcmp.gt.s32.totalorder 0, %v258
    %v260 = vsel %vm259, 0, %v258
    %v261 = vsub.s32 32, %v260
    %v262 = vshll.u32 %v253, %v260
    %v263 = vshrl.u32 %v245, %v261
    %v264 = vor.u32 %v262, %v263
    %v265 = vsub.s32 4294967266, %v260
    %v266 = vadd.s32 %v265, 127
    %v267 = vshll.u32 %v266, 23
    %v268 = vor.u32 4788187, %v267
    %v269 = vand.u32 2147483647, %v268
    %v271 = vcvt.s32.f32 %v264
    %v272 = vmul.f32 %v271, %v269
    %v273 = vxor.u32 %v272, 2147483648
    %v274 = vsel %vm191, %v273, %v272
    %v275 = vsub.s32 4, %v251
    %v276 = vsel %vm191, %v275, %v251
    %v277 = vsel %vm190, %v84, %v274
    %v278 = vsel %vm190, 0, %v276
    %v279 = vcosq.f32.pop %v277
    %v280 = vsinq.f32.pop %v277
    %vm281 = vweird.f32 %v84
    %v282 = vadd.s32 %v278, 3
    %v283 = vand.u32 %v282, 3
    %vm284 = vcmp.lt.s32.totalorder %v283, 2
    %vm285 = vcmp.eq.s32.totalorder %v283, 0
    %v286 = vxor.u32 %v280, 2147483648
    %v287 = vsel %vm285, %v279, %v286
    %vm288 = vcmp.eq.s32.totalorder %v283, 2
    %v289 = vxor.u32 %v279, 2147483648
    %v290 = vsel %vm288, %v289, %v280
    %v291 = vsel %vm284, %v287, %v290
    %v292 = vsel %vm281, nan, %v291
    %v293 = vmul.f32 %v83, %v292
    %v294 = vmul.f32 %v62, %v188
    %v295 = vadd.f32 %v57, %v294
    %v296 = vmul.f32 %v64, %v293
    %v297 = vadd.f32 %v58, %v296
    %298 = vst [vmem:[#allocation8] sm:$0xff] %v295
    %299 = vst [vmem:[#allocation8 + $0x8] sm:$0xff] %v297
    // Predicated region
    $region30: #{tpu_custom_call.1} parent=1 // pred_check
      _
    $region31: #{tpu_custom_call.1} parent=1 // pred_check_branch
      %301 = sbr.rel (0) target = $region33
    $region32: #{tpu_custom_call.1} parent=1 // pred_region
      %s303 = ssub.s32 256, 256
      %304 = vsyncadd [#allocation4], %s303
      %s305 = sshll.u32 [#allocation8], 4
      %s306 = int_to_ptr.vmem [resolvable:$true] %s305
      %311 = dma.vmem_to_hbm [thread:$0]  %s306, 256, %s4, [#allocation4], 128, 128, 8
    $region33: #{tpu_custom_call.1} parent=1 // pred_fallthru
      _
    // Predicated region
    $region34: #{tpu_custom_call.1} parent=1 // pred_check
      _
    $region35: #{tpu_custom_call.1} parent=1 // pred_check_branch
      %313 = sbr.rel (0) target = $region37
    $region36: #{tpu_custom_call.1} parent=1 // pred_region
      %314 = dma.done [#allocation4], 256
    $region37: #{tpu_custom_call.1} parent=1 // pred_fallthru
      _
    %315 = vsyncpa [#allocation3], 1
    %316 = vsyncpa [#allocation6], 1
    %317 = vsyncpa [#allocation4], 1

</llo_original>
